<compile_context>
chip_gen: v6e
topology: v6e:2x2x1
jax: 0.10.0
libtpu: 0.0.40
codegen_flags: <defaults>
</compile_context>

<pallas_src>
import functools

import jax
import jax.numpy as jnp
from jax.experimental import pallas as pl
from jax.experimental.pallas import tpu as pltpu

LANES = 128
SUBLANES = 8
_TARGET_TILE_BYTES = 1 << 20  # ~1 MiB per tile (per array)


def _leaky_relu_kernel(x_ref, o_ref, *, negative_slope):
    x = x_ref[...]
    slope = jnp.asarray(negative_slope, x.dtype)
    o_ref[...] = jnp.where(x >= 0, x, x * slope)


def leaky_relu(x, negative_slope: float = 0.01):
    """Elementwise LeakyReLU (semantics of torch.nn.LeakyReLU(negative_slope))."""
    orig_shape = x.shape
    dtype = x.dtype
    n = x.size
    if n == 0:
        return x

    # Pick the widest lane-dense slab width that needs NO padding; fall back
    # to 128 lanes with at most one (8,128) chunk of zero padding.
    lane_w = LANES
    for w in (1024, 512, 256, LANES):
        if n >= SUBLANES * w and n % (SUBLANES * w) == 0:
            lane_w = w
            break

    min_chunk = SUBLANES * lane_w
    n_pad = ((n + min_chunk - 1) // min_chunk) * min_chunk
    pad = n_pad - n

    x_flat = x.reshape(-1)  # metadata-only for contiguous layout
    if pad:
        # LeakyReLU(0) == 0 and the tail is sliced off, so zero padding is safe.
        x_flat = jnp.pad(x_flat, (0, pad))

    rows = n_pad // lane_w  # multiple of 8 by construction
    itemsize = jnp.dtype(dtype).itemsize

    # ~1 MiB tiles, rounded to a multiple of 8 sublanes, clamped to the slab.
    block_rows = max(SUBLANES,
                     (_TARGET_TILE_BYTES // (lane_w * itemsize)) // SUBLANES * SUBLANES)
    block_rows = min(block_rows, rows)

    x2d = x_flat.reshape(rows, lane_w)
    grid = (pl.cdiv(rows, block_rows),)

    out2d = pl.pallas_call(
        functools.partial(_leaky_relu_kernel, negative_slope=negative_slope),
        out_shape=jax.ShapeDtypeStruct((rows, lane_w), dtype),
        grid_spec=pl.GridSpec(
            grid=grid,
            in_specs=[pl.BlockSpec((block_rows, lane_w), lambda i: (i, 0))],
            out_specs=pl.BlockSpec((block_rows, lane_w), lambda i: (i, 0)),
        ),
        compiler_params=pltpu.CompilerParams(
            dimension_semantics=("parallel",),
        ),
    )(x2d)

    out_flat = out2d.reshape(-1)
    if pad:
        out_flat = out_flat[:n]
    return out_flat.reshape(orig_shape)


if __name__ == "__main__":
    NEG_SLOPE = 0.1  # like nn.LeakyReLU(0.1)

    key = jax.random.PRNGKey(0)
    k1, k2 = jax.random.split(key)

    # Aligned case: 2*4*16*16 = 2048 elements -> (8, 256) slab, no padding.
    x1 = jax.random.normal(k1, (2, 4, 16, 16), dtype=jnp.float32)
    y1 = jax.block_until_ready(leaky_relu(x1, NEG_SLOPE))
    ref1 = jnp.where(x1 >= 0, x1, jnp.float32(NEG_SLOPE) * x1)
    assert y1.shape == x1.shape and y1.dtype == x1.dtype
    assert jnp.array_equal(y1, ref1), "mismatch vs reference (aligned path)"

    # Ragged case: exercises the small zero-padded tail path.
    x2 = jax.random.normal(k2, (3, 7, 5), dtype=jnp.float32)
    y2 = jax.block_until_ready(leaky_relu(x2, NEG_SLOPE))
    ref2 = jnp.where(x2 >= 0, x2, jnp.float32(NEG_SLOPE) * x2)
    assert y2.shape == x2.shape and y2.dtype == x2.dtype
    assert jnp.array_equal(y2, ref2), "mismatch vs reference (padded path)"

    print("KERNEL_OK")
</pallas_src>

<mosaic_0001>
module attributes {stable_mosaic.version = 11 : i64} {
  func.func @_leaky_relu_kernel(%arg0: i32, %arg1: memref<8x256xf32, #tpu.memory_space<vmem>>, %arg2: memref<8x256xf32, #tpu.memory_space<vmem>>) attributes {dimension_semantics = [#tpu.dimension_semantics<parallel>], iteration_bounds = array<i64: 1>, scalar_prefetch = 0 : i64, scratch_operands = 0 : i64, tpu.core_type = #tpu.core_type<tc>, window_params = [{transform_indices = @transform_0, window_bounds = array<i64: 8, 256>}, {transform_indices = @transform_1, window_bounds = array<i64: 8, 256>}]} {
    %c0 = arith.constant 0 : index
    %c0_0 = arith.constant 0 : index
    %0 = vector.load %arg1[%c0, %c0_0] : memref<8x256xf32, #tpu.memory_space<vmem>>, vector<8x256xf32>
    %cst = arith.constant 0.000000e+00 : f32
    %1 = vector.broadcast %cst : f32 to vector<8x256xf32>
    %2 = arith.cmpf oge, %0, %1 : vector<8x256xf32>
    %cst_1 = arith.constant 1.000000e-01 : f32
    %3 = vector.broadcast %cst_1 : f32 to vector<8x256xf32>
    %4 = arith.mulf %0, %3 : vector<8x256xf32>
    %5 = arith.select %2, %0, %4 : vector<8x256xi1>, vector<8x256xf32>
    %c0_2 = arith.constant 0 : index
    %c0_3 = arith.constant 0 : index
    %6 = vector.load %arg2[%c0_2, %c0_3] : memref<8x256xf32, #tpu.memory_space<vmem>>, vector<8x256xf32>
    tpu.vector_store %arg2[%c0_2, %c0_3], %5 {strides = array<i32>} : memref<8x256xf32, #tpu.memory_space<vmem>>, vector<8x256xf32>,
    return
  }
  func.func @transform_0(%arg0: i32) -> (i32, i32) {
    %c0_i32 = arith.constant 0 : i32
    %c0_i32_0 = arith.constant 0 : i32
    return %arg0, %c0_i32 : i32, i32
  }
  func.func @transform_1(%arg0: i32) -> (i32, i32) {
    %c0_i32 = arith.constant 0 : i32
    %c0_i32_0 = arith.constant 0 : i32
    return %arg0, %c0_i32 : i32, i32
  }
}

</mosaic_0001>

<llo_original>
// kernel: tpu_custom_call.1
$region0: #{tpu_custom_call.1}
  #allocation0 [shape = 'u32[]', space=smem, size = 0x4, offset = 0x4, fixed_abs, tag = 'smem constant byte address 0x4 - core index']
  #allocation1 [shape = 'u32[144,128]{1,0:T(1,128)}', space=vmem, size = 0x12000, scoped, tag = 'internal scratch']
  %s0 = inlined_call_operand.hbm [shape: f32[8,256], index: 0, kind: input, shape index: {}]
  %s1 = inlined_call_operand.hbm [shape: f32[8,256], index: 1, kind: output, shape index: {}]
  %s2 = sld [smem:[#allocation0]]
  $region18: #{tpu_custom_call.1} parent=0
    _
  %s4 = ssub.s32 1, %s2
  %s5 = scalar_select 0, %s4, %s2
  $region1: #{tpu_custom_call.1} parent=0
    #allocation2 [shape = 'u8[8192]{0}', space=vmem, size = 0x2000, scoped, tag = 'input window, operand 0, single buffered']
    #allocation3 [shape = 's32[1]{0}', space=sflag, size = 0x4, scoped, tag = 'scoped memory for tpu_custom_call.1']
    #allocation4 [shape = 's32[1]{0}', space=sflag, size = 0x4, scoped, tag = 'scoped memory for tpu_custom_call.1']
    #allocation5 [shape = 'u8[8192]{0}', space=vmem, size = 0x2000, scoped, tag = 'output window, operand 0, single buffered']
    %6 = vsyncpa [#allocation3], 0
    %7 = vsyncpa [#allocation4], 0
    // Predicated region
    $region2: #{tpu_custom_call.1} parent=1 // pred_check
      _
    $region3: #{tpu_custom_call.1} parent=1 // pred_check_branch
      %9 = sbr.rel (0) target = $region5
    $region4: #{tpu_custom_call.1} parent=1 // pred_region
      %s11 = ssub.s32 256, 256
      %12 = vsyncadd [#allocation3], %s11
      %s14 = sshll.u32 [#allocation2], 4
      %s15 = int_to_ptr.vmem [resolvable:$true] %s14
      %17 = dma.hbm_to_vmem [thread:$0]  %s0, 256, %s15, [#allocation3]
    $region5: #{tpu_custom_call.1} parent=1 // pred_fallthru
      _
    // Predicated region
    $region6: #{tpu_custom_call.1} parent=1 // pred_check
      _
    $region7: #{tpu_custom_call.1} parent=1 // pred_check_branch
      %19 = sbr.rel (0) target = $region9
    $region8: #{tpu_custom_call.1} parent=1 // pred_region
      %20 = dma.done [#allocation3], 256
    $region9: #{tpu_custom_call.1} parent=1 // pred_fallthru
      _
    %v21 = vld [vmem:[#allocation2] sm:$0xff]
    %v22 = vld [vmem:[#allocation2 + $0x8] sm:$0xff]
    %vm23 = vcmp.ge.f32.partialorder %v21, 0.0
    %vm24 = vcmp.ge.f32.partialorder %v22, 0.0
    %v25 = vmul.f32 %v21, 0.1
    %v26 = vmul.f32 %v22, 0.1
    %v27 = vsel %vm23, %v21, %v25
    %v28 = vsel %vm24, %v22, %v26
    %29 = vst [vmem:[#allocation5] sm:$0xff] %v27
    %30 = vst [vmem:[#allocation5 + $0x8] sm:$0xff] %v28
    // Predicated region
    $region10: #{tpu_custom_call.1} parent=1 // pred_check
      _
    $region11: #{tpu_custom_call.1} parent=1 // pred_check_branch
      %32 = sbr.rel (0) target = $region13
    $region12: #{tpu_custom_call.1} parent=1 // pred_region
      %s34 = ssub.s32 256, 256
      %35 = vsyncadd [#allocation4], %s34
      %s37 = sshll.u32 [#allocation5], 4
      %s38 = int_to_ptr.vmem [resolvable:$true] %s37
      %40 = dma.vmem_to_hbm [thread:$0]  %s38, 256, %s1, [#allocation4]
    $region13: #{tpu_custom_call.1} parent=1 // pred_fallthru
      _
    // Predicated region
    $region14: #{tpu_custom_call.1} parent=1 // pred_check
      _
    $region15: #{tpu_custom_call.1} parent=1 // pred_check_branch
      %42 = sbr.rel (0) target = $region17
    $region16: #{tpu_custom_call.1} parent=1 // pred_region
      %43 = dma.done [#allocation4], 256
    $region17: #{tpu_custom_call.1} parent=1 // pred_fallthru
      _
    %44 = vsyncpa [#allocation3], 1
    %45 = vsyncpa [#allocation4], 1

</llo_original>
